<compile_context>
chip_gen: v7x
topology: tpu7x:2x2x1
jax: 0.10.0
libtpu: 0.0.40
codegen_flags: <defaults>
</compile_context>

<pallas_src>
import math

import jax
import jax.numpy as jnp
from jax.experimental import pallas as pl
from jax.experimental.pallas import tpu as pltpu


# Per-buffer tile caps.  4 MiB/buffer * (2 input bufs + 2 output bufs) = 16 MiB
# of scoped VMEM — safe under the 32 MiB limit on v5e/v6e/v7x.
_MAX_TILE_BYTES = 4 * 1024 * 1024
# Don't shrink tiles below ~2 MiB when splitting work for v7x's 2 TensorCores
# (per-grid-step overhead would start to dominate).
_MIN_TILE_BYTES = 2 * 1024 * 1024


def _gaussian_body(neg_inv_two_sigma: float):
    """Kernel body with the scalar constant baked in at trace time."""

    def kernel(x_ref, o_ref):
        x = x_ref[...]
        # Python-float constant is weakly typed: compute stays in the input
        # dtype (f32 stays f32; bf16 stays bf16 on the bf16 VPU/EUP path).
        o_ref[...] = jnp.exp((x * x) * neg_inv_two_sigma).astype(o_ref.dtype)

    return kernel


def _choose_lanes(total: int) -> int:
    """Largest lane-dense width (multiple of 128) dividing `total`."""
    for cand in (1024, 512, 256, 128):
        if total % cand == 0:
            return cand
    raise AssertionError("caller must ensure total % 128 == 0")


def _choose_tile_rows(rows: int, lanes: int, itemsize: int) -> int:
    """Row-tile size: <= ~4 MiB/buffer, >= ~2 MiB/buffer, aim for >=4 tiles."""
    bytes_per_row = lanes * itemsize
    max_rows = max(8, (_MAX_TILE_BYTES // bytes_per_row) // 8 * 8)
    min_rows = max(8, (_MIN_TILE_BYTES // bytes_per_row) // 8 * 8)
    # Aim for at least ~4 grid steps so both v7x TensorCores get fed.
    target = max(8, ((pl.cdiv(rows, 4) + 7) // 8) * 8)
    tile_rows = min(max_rows, max(min_rows, target))
    if tile_rows >= rows:
        # Whole array fits in one tile: block dim == full dim is always legal.
        tile_rows = rows
    return tile_rows


def _run_2d(x2d: jax.Array, neg_inv_two_sigma: float) -> jax.Array:
    """Run the elementwise Gaussian kernel over a lane-dense 2D view."""
    rows, lanes = x2d.shape
    tile_rows = _choose_tile_rows(rows, lanes, x2d.dtype.itemsize)
    grid = (pl.cdiv(rows, tile_rows),)  # masked edge block if not divisible
    n = x2d.size
    nbytes = n * x2d.dtype.itemsize

    return pl.pallas_call(
        _gaussian_body(neg_inv_two_sigma),
        out_shape=jax.ShapeDtypeStruct((rows, lanes), x2d.dtype),
        grid_spec=pl.GridSpec(
            grid=grid,
            # If xprof ever shows exposed input DMA here, sweep
            # pipeline_mode=pl.Buffered(3) on this input spec.
            in_specs=[pl.BlockSpec((tile_rows, lanes), lambda i: (i, 0))],
            out_specs=pl.BlockSpec((tile_rows, lanes), lambda i: (i, 0)),
        ),
        compiler_params=pltpu.CompilerParams(
            dimension_semantics=("parallel",),
            vmem_limit_bytes=32 * 1024 * 1024,
        ),
        cost_estimate=pl.CostEstimate(
            flops=2 * n,
            transcendentals=n,
            bytes_accessed=2 * nbytes,
        ),
    )(x2d)


def gaussian_kernel_forward(dist_map: jax.Array,
                            delta_var: float,
                            pmaps_threshold: float) -> jax.Array:
    """Pallas implementation of GaussianKernel.forward (any shape)."""
    assert 0.0 < pmaps_threshold < 1.0, "pmaps_threshold must be in (0, 1)"
    two_sigma = delta_var * delta_var / -math.log(pmaps_threshold)
    neg_inv_two_sigma = -1.0 / two_sigma

    orig_shape = dist_map.shape
    total = dist_map.size
    if total == 0:
        return dist_map

    if total % 128 == 0:
        # Hot path: pure-metadata reshape to a lane-dense 2D view, exactly one
        # HBM read + one HBM write, no padding anywhere.
        lanes = _choose_lanes(total)
        rows = total // lanes
        out2d = _run_2d(dist_map.reshape(rows, lanes), neg_inv_two_sigma)
        return out2d.reshape(orig_shape)

    # Ragged fallback (total % 128 != 0): process the 128-aligned bulk with the
    # Pallas kernel and the <128-element tail with plain jnp.exp.  Avoids the
    # full-array pad/slice round trips of the previous version.
    flat = dist_map.reshape(-1)
    bulk = (total // 128) * 128
    if bulk == 0:
        out = jnp.exp((flat * flat) * neg_inv_two_sigma).astype(dist_map.dtype)
        return out.reshape(orig_shape)

    lanes = _choose_lanes(bulk)
    rows = bulk // lanes
    bulk_out = _run_2d(flat[:bulk].reshape(rows, lanes), neg_inv_two_sigma)
    tail = flat[bulk:]
    tail_out = jnp.exp((tail * tail) * neg_inv_two_sigma).astype(dist_map.dtype)
    out = jnp.concatenate([bulk_out.reshape(-1), tail_out])
    return out.reshape(orig_shape)


def gaussian_kernel_ref(dist_map: jax.Array,
                        delta_var: float,
                        pmaps_threshold: float) -> jax.Array:
    """Pure-JAX reference matching the PyTorch forward."""
    two_sigma = delta_var * delta_var / -math.log(pmaps_threshold)
    return jnp.exp(-dist_map * dist_map / two_sigma)


if __name__ == "__main__":
    # Deterministic "module parameters" (constructor args of GaussianKernel).
    delta_var = 0.5
    pmaps_threshold = 0.9

    key = jax.random.PRNGKey(0)

    # Main example input, NCHW (small, consistent with the module).
    x = jax.random.uniform(key, (2, 4, 16, 16), dtype=jnp.float32,
                           minval=0.0, maxval=2.0)
    out = gaussian_kernel_forward(x, delta_var, pmaps_threshold)
    out = jax.block_until_ready(out)
    ref = gaussian_kernel_ref(x, delta_var, pmaps_threshold)
    assert out.shape == x.shape and out.dtype == x.dtype
    assert jnp.allclose(out, ref, atol=1e-6, rtol=1e-6)

    # Secondary check: odd shape exercising the ragged bulk+tail path.
    x2 = jax.random.uniform(jax.random.PRNGKey(1), (3, 5, 7, 11),
                            dtype=jnp.float32, minval=0.0, maxval=2.0)
    out2 = jax.block_until_ready(
        gaussian_kernel_forward(x2, delta_var, pmaps_threshold))
    ref2 = gaussian_kernel_ref(x2, delta_var, pmaps_threshold)
    assert out2.shape == x2.shape and out2.dtype == x2.dtype
    assert jnp.allclose(out2, ref2, atol=1e-6, rtol=1e-6)

    # Tertiary check: multiple-of-128 but not of 256 (lanes=128 hot path).
    x3 = jax.random.uniform(jax.random.PRNGKey(2), (2, 4, 24, 20),
                            dtype=jnp.float32, minval=0.0, maxval=2.0)
    out3 = jax.block_until_ready(
        gaussian_kernel_forward(x3, delta_var, pmaps_threshold))
    ref3 = gaussian_kernel_ref(x3, delta_var, pmaps_threshold)
    assert out3.shape == x3.shape and out3.dtype == x3.dtype
    assert jnp.allclose(out3, ref3, atol=1e-6, rtol=1e-6)

    print("KERNEL_OK")
</pallas_src>

<mosaic_0001>
module attributes {stable_mosaic.version = 11 : i64} {
  func.func @kernel(%arg0: i32, %arg1: memref<2x1024xf32, #tpu.memory_space<vmem>>, %arg2: memref<2x1024xf32, #tpu.memory_space<vmem>>) attributes {dimension_semantics = [#tpu.dimension_semantics<parallel>], iteration_bounds = array<i64: 1>, scalar_prefetch = 0 : i64, scratch_operands = 0 : i64, tpu.core_type = #tpu.core_type<tc>, window_params = [{transform_indices = @transform_0, window_bounds = array<i64: 2, 1024>}, {transform_indices = @transform_1, window_bounds = array<i64: 2, 1024>}]} {
    %c0 = arith.constant 0 : index
    %c0_0 = arith.constant 0 : index
    %0 = vector.load %arg1[%c0, %c0_0] : memref<2x1024xf32, #tpu.memory_space<vmem>>, vector<2x1024xf32>
    %1 = arith.mulf %0, %0 : vector<2x1024xf32>
    %cst = arith.constant -0.421442062 : f32
    %2 = vector.broadcast %cst : f32 to vector<2x1024xf32>
    %3 = arith.mulf %1, %2 : vector<2x1024xf32>
    %4 = math.exp %3 : vector<2x1024xf32>
    %c0_1 = arith.constant 0 : index
    %c0_2 = arith.constant 0 : index
    %5 = vector.load %arg2[%c0_1, %c0_2] : memref<2x1024xf32, #tpu.memory_space<vmem>>, vector<2x1024xf32>
    tpu.vector_store %arg2[%c0_1, %c0_2], %4 {strides = array<i32>} : memref<2x1024xf32, #tpu.memory_space<vmem>>, vector<2x1024xf32>,
    return
  }
  func.func @transform_0(%arg0: i32) -> (i32, i32) {
    %c0_i32 = arith.constant 0 : i32
    %c0_i32_0 = arith.constant 0 : i32
    return %arg0, %c0_i32 : i32, i32
  }
  func.func @transform_1(%arg0: i32) -> (i32, i32) {
    %c0_i32 = arith.constant 0 : i32
    %c0_i32_0 = arith.constant 0 : i32
    return %arg0, %c0_i32 : i32, i32
  }
}

</mosaic_0001>

<llo_original>
// kernel: tpu_custom_call.1
$region0: #{tpu_custom_call.1}
  #allocation0 [shape = 'u32[]', space=smem, size = 0x4, offset = 0x4, fixed_abs, tag = 'smem constant byte address 0x4 - core index']
  #allocation1 [shape = 'u32[144,128]{1,0:T(1,128)}', space=vmem, size = 0x12000, scoped, tag = 'internal scratch']
  %s0 = inlined_call_operand.hbm [shape: f32[2,1024], index: 0, kind: input, shape index: {}]
  %s1 = inlined_call_operand.hbm [shape: f32[2,1024], index: 1, kind: output, shape index: {}]
  %s2 = sld [smem:[#allocation0]]
  $region18: #{tpu_custom_call.1} parent=0
    _
  %s4 = ssub.s32 1, %s2
  %s5 = scalar_select 0, %s4, %s2
  $region1: #{tpu_custom_call.1} parent=0
    #allocation2 [shape = 'u8[8192]{0}', space=vmem, size = 0x2000, scoped, tag = 'input window, operand 0, single buffered']
    #allocation3 [shape = 's32[1]{0}', space=sflag, size = 0x4, scoped, tag = 'scoped memory for tpu_custom_call.1']
    #allocation4 [shape = 's32[1]{0}', space=sflag, size = 0x4, scoped, tag = 'scoped memory for tpu_custom_call.1']
    #allocation5 [shape = 'u8[8192]{0}', space=vmem, size = 0x2000, scoped, tag = 'output window, operand 0, single buffered']
    %6 = vsyncpa [#allocation3], 0
    %7 = vsyncpa [#allocation4], 0
    // Predicated region
    $region2: #{tpu_custom_call.1} parent=1 // pred_check
      _
    $region3: #{tpu_custom_call.1} parent=1 // pred_check_branch
      %9 = sbr.rel (0) target = $region5
    $region4: #{tpu_custom_call.1} parent=1 // pred_region
      %s11 = ssub.s32 256, 256
      %12 = vsyncadd [#allocation3], %s11
      %s14 = sshll.u32 [#allocation2], 4
      %s15 = int_to_ptr.vmem [resolvable:$true] %s14
      %17 = dma.hbm_to_vmem [thread:$0]  %s0, 256, %s15, [#allocation3]
    $region5: #{tpu_custom_call.1} parent=1 // pred_fallthru
      _
    // Predicated region
    $region6: #{tpu_custom_call.1} parent=1 // pred_check
      _
    $region7: #{tpu_custom_call.1} parent=1 // pred_check_branch
      %19 = sbr.rel (0) target = $region9
    $region8: #{tpu_custom_call.1} parent=1 // pred_region
      %20 = dma.done [#allocation3], 256
    $region9: #{tpu_custom_call.1} parent=1 // pred_fallthru
      _
    %v21 = vld [vmem:[#allocation2] sm:$0xff]
    %v22 = vld [vmem:[#allocation2 + $0x8] sm:$0xff]
    %v23 = vmul.f32 %v21, %v21
    %v24 = vmul.f32 %v22, %v22
    %v25 = vmul.f32 %v23, -0.42144206
    %v26 = vmul.f32 %v24, -0.42144206
    %v27 = vmul.f32 %v25, 1.442695
    %v28 = vpow.pop %v27
    %v29 = vmul.f32 %v26, 1.442695
    %v30 = vpow.pop %v29
    %31 = vst [vmem:[#allocation5] sm:$0xff] %v28
    %32 = vst [vmem:[#allocation5 + $0x8] sm:$0xff] %v30
    // Predicated region
    $region10: #{tpu_custom_call.1} parent=1 // pred_check
      _
    $region11: #{tpu_custom_call.1} parent=1 // pred_check_branch
      %34 = sbr.rel (0) target = $region13
    $region12: #{tpu_custom_call.1} parent=1 // pred_region
      %s36 = ssub.s32 256, 256
      %37 = vsyncadd [#allocation4], %s36
      %s39 = sshll.u32 [#allocation5], 4
      %s40 = int_to_ptr.vmem [resolvable:$true] %s39
      %42 = dma.vmem_to_hbm [thread:$0]  %s40, 256, %s1, [#allocation4]
    $region13: #{tpu_custom_call.1} parent=1 // pred_fallthru
      _
    // Predicated region
    $region14: #{tpu_custom_call.1} parent=1 // pred_check
      _
    $region15: #{tpu_custom_call.1} parent=1 // pred_check_branch
      %44 = sbr.rel (0) target = $region17
    $region16: #{tpu_custom_call.1} parent=1 // pred_region
      %45 = dma.done [#allocation4], 256
    $region17: #{tpu_custom_call.1} parent=1 // pred_fallthru
      _
    %46 = vsyncpa [#allocation3], 1
    %47 = vsyncpa [#allocation4], 1

</llo_original>
